<compile_context>
chip_gen: v7x
topology: tpu7x:2x2x1
jax: 0.10.0
libtpu: 0.0.40
codegen_flags: <defaults>
</compile_context>

<pallas_src>
import functools
import math

import jax
import jax.numpy as jnp
from jax.experimental import pallas as pl
from jax.experimental.pallas import tpu as pltpu

LANES = 128
SUBLANES = 8


def _round_up(x, m):
    return (x + m - 1) // m * m


def _row_align(dtype):
    """Second-to-last block dim alignment for the dtype's native tiling."""
    itemsize = jnp.dtype(dtype).itemsize
    return max(SUBLANES, SUBLANES * (4 // max(1, itemsize)))  # f32:8 bf16:16 i8:32


def _vmem_capacity_bytes():
    try:
        return int(pltpu.get_tpu_info().vmem_capacity_bytes)
    except Exception:
        return 128 * 1024 * 1024  # v5e / v6e physical VMEM


def _num_tensorcores():
    """Best-effort TensorCore-per-device count (2 on v7x, 1 on v5e/v6e)."""
    try:
        info = pltpu.get_tpu_info()
        for attr in ("num_cores", "num_tensorcores", "tensorcores_per_chip",
                     "num_cores_per_chip", "cores_per_chip"):
            v = getattr(info, attr, None)
            if v:
                return max(1, int(v))
    except Exception:
        pass
    return 1


_VMEM_CAP = _vmem_capacity_bytes()
_VMEM_LIMIT = int(min(_VMEM_CAP // 2, 64 * 1024 * 1024))
_NUM_CORES = _num_tensorcores()

# Log kernel streams 1 input -> up to 4 MiB (f32-equivalent) per block.
_LOG_BLOCK_ROWS = max(32, min(8192, (_VMEM_LIMIT // 8) // (LANES * 4)) // 32 * 32)
# MSE kernel streams 2 inputs (x2 double-buffer) -> up to 2 MiB per input per block.
_MSE_BLOCK_ROWS = max(32, min(4096, (_VMEM_LIMIT // 16) // (LANES * 4)) // 32 * 32)


# ----------------------------- Pallas kernels ------------------------------ #

def _sum_log_kernel(x_ref, o_ref, *, block_rows, total_rows):
    """Accumulate sum(log(x)) into a per-core resident (1, 8, 128) f32 slab."""
    c = pl.program_id(0)   # core-split ("parallel") axis
    i = pl.program_id(1)   # reduction ("arbitrary") axis

    @pl.when(i == 0)
    def _():
        o_ref[...] = jnp.zeros_like(o_ref)

    row0 = (c * pl.num_programs(1) + i) * block_rows
    x = x_ref[...].astype(jnp.float32)

    def _accum(vals):
        o_ref[...] += vals.reshape(
            block_rows // SUBLANES, SUBLANES, LANES).sum(axis=0)[None]

    @pl.when(row0 + block_rows <= total_rows)   # full in-bounds block: no mask
    def _():
        _accum(jnp.log(x))

    @pl.when(row0 + block_rows > total_rows)    # ragged / clamped tail block
    def _():
        row_idx = row0 + jax.lax.broadcasted_iota(
            jnp.int32, (block_rows, LANES), 0)
        # Mask BEFORE the log so unspecified padding cannot inject NaN/Inf.
        _accum(jnp.log(jnp.where(row_idx < total_rows, x, 1.0)))


def _sum_sqdiff_kernel(a_ref, b_ref, o_ref, *, block_rows, total_rows):
    """Accumulate sum((a-b)^2) into a per-core resident (1, 8, 128) f32 slab."""
    c = pl.program_id(0)
    i = pl.program_id(1)

    @pl.when(i == 0)
    def _():
        o_ref[...] = jnp.zeros_like(o_ref)

    row0 = (c * pl.num_programs(1) + i) * block_rows
    d = a_ref[...].astype(jnp.float32) - b_ref[...].astype(jnp.float32)
    sq = d * d

    def _accum(vals):
        o_ref[...] += vals.reshape(
            block_rows // SUBLANES, SUBLANES, LANES).sum(axis=0)[None]

    @pl.when(row0 + block_rows <= total_rows)
    def _():
        _accum(sq)

    @pl.when(row0 + block_rows > total_rows)
    def _():
        row_idx = row0 + jax.lax.broadcasted_iota(
            jnp.int32, (block_rows, LANES), 0)
        _accum(jnp.where(row_idx < total_rows, sq, 0.0))


# ------------------------------ JAX wrappers -------------------------------- #

def _as_rows(x, neutral):
    """Flatten x to (rows, 128). Zero-copy when x.size % 128 == 0; otherwise
    appends a tiny (<128 element) neutral pad."""
    flat = jnp.reshape(x, (-1,))
    n = flat.shape[0]
    rem = n % LANES
    if rem:
        # TODO(synk): a manual-DMA (memory_space=pl.ANY) path could avoid this
        # small pad-copy for lane-unaligned tensors.
        pad = jnp.full((LANES - rem,), neutral, dtype=flat.dtype)
        flat = jnp.concatenate([flat, pad])
    rows = flat.shape[0] // LANES
    return flat.reshape(rows, LANES), rows


def _streaming_reduce(kernel_fn, inputs_2d, total_rows, max_block_rows):
    """Run a streaming row-block reduction over (rows, 128) inputs.

    Accumulates into per-core (1, 8, 128) slabs (resident across the reduction
    axis), reduced once on the wrapper side. Returns a scalar f32."""
    align = max(_row_align(x.dtype) for x in inputs_2d)
    block_rows = min(max_block_rows, _round_up(total_rows, align))
    num_blocks = pl.cdiv(total_rows, block_rows)

    # Multi-TensorCore split only where it pays (v7x) and there is enough work.
    ncores = _NUM_CORES if (_NUM_CORES > 1 and num_blocks >= 2 * _NUM_CORES) else 1
    bpc = pl.cdiv(num_blocks, ncores)

    if ncores == 1:
        in_index = lambda c, i: (i, 0)
    else:
        in_index = lambda c, i: (jnp.minimum(c * bpc + i, num_blocks - 1), 0)

    kernel = functools.partial(
        kernel_fn, block_rows=block_rows, total_rows=total_rows)

    out = pl.pallas_call(
        kernel,
        out_shape=jax.ShapeDtypeStruct((ncores, SUBLANES, LANES), jnp.float32),
        grid_spec=pltpu.PrefetchScalarGridSpec(
            num_scalar_prefetch=0,
            grid=(ncores, bpc),
            in_specs=[pl.BlockSpec((block_rows, LANES), in_index)
                      for _ in inputs_2d],
            out_specs=pl.BlockSpec((1, SUBLANES, LANES), lambda c, i: (c, 0, 0)),
        ),
        compiler_params=pltpu.CompilerParams(
            dimension_semantics=("parallel", "arbitrary"),
            vmem_limit_bytes=_VMEM_LIMIT),
    )(*inputs_2d)
    return jnp.sum(out)


def pallas_sum_log(x):
    """sum(log(x)) over all elements of x (single-pass, native dtype input)."""
    x2, rows = _as_rows(x, neutral=1)
    return _streaming_reduce(_sum_log_kernel, [x2], rows, _LOG_BLOCK_ROWS)


def pallas_mse(a, b):
    """mean((a - b)^2) over all elements (single-pass, native dtype inputs)."""
    a2, rows_a = _as_rows(a, neutral=0)
    b2, rows_b = _as_rows(b, neutral=0)
    assert rows_a == rows_b
    s = _streaming_reduce(_sum_sqdiff_kernel, [a2, b2], rows_a, _MSE_BLOCK_ROWS)
    return s / jnp.float32(a.size)


def fusion_rd_loss_p(output, target, lmbda=0.01):
    """JAX/Pallas port of FusionRDLoss_P.forward.

    output: dict with
        'likelihoods': dict[str, array]  (values in (0, 1])
        'features':    list of 4 arrays, NCHW
    target: list of 4 arrays, NCHW (same shapes as output['features'])
    """
    out = {}

    num_pixels = 0
    for p in target:
        N, _, H, W = p.shape
        num_pixels += N * H * W

    # bpp_loss = sum over likelihood tensors of sum(log) / (-log(2)*num_pixels)
    total_log = None
    for lk in output["likelihoods"].values():
        s = pallas_sum_log(lk)
        total_log = s if total_log is None else total_log + s
    out["bpp_loss"] = total_log / (-math.log(2) * num_pixels)

    # per-level MSE (mean reduction, like nn.MSELoss default)
    level_mse = [pallas_mse(f, t) for f, t in zip(output["features"], target)]

    out["mse_loss"] = level_mse[0] + level_mse[1] + level_mse[2] + level_mse[3]
    # torch .item() -> device scalars here
    out["p2_mse"] = level_mse[0]
    out["p3_mse"] = level_mse[1]
    out["p4_mse"] = level_mse[2]
    out["p5_mse"] = level_mse[3]

    out["loss"] = lmbda * 255 ** 2 * out["mse_loss"] + out["bpp_loss"]
    return out


# ------------------------------ reference ----------------------------------- #

def fusion_rd_loss_p_ref(output, target, lmbda=0.01):
    num_pixels = 0
    for p in target:
        N, _, H, W = p.shape
        num_pixels += N * H * W
    bpp = sum(
        jnp.sum(jnp.log(l.astype(jnp.float32))) / (-math.log(2) * num_pixels)
        for l in output["likelihoods"].values()
    )
    mses = [
        jnp.mean(jnp.square(f.astype(jnp.float32) - t.astype(jnp.float32)))
        for f, t in zip(output["features"], target)
    ]
    mse = mses[0] + mses[1] + mses[2] + mses[3]
    return {
        "bpp_loss": bpp,
        "mse_loss": mse,
        "p2_mse": mses[0],
        "p3_mse": mses[1],
        "p4_mse": mses[2],
        "p5_mse": mses[3],
        "loss": lmbda * 255 ** 2 * mse + bpp,
    }


# -------------------------------- main --------------------------------------- #

if __name__ == "__main__":
    key = jax.random.PRNGKey(0)
    k_feats, k_tgts, k_ly, k_lz = jax.random.split(key, 4)

    # Feature pyramid (p2..p5), NCHW
    feat_shapes = [(2, 4, 16, 16), (2, 4, 8, 8), (2, 4, 4, 4), (2, 4, 2, 2)]
    fkeys = jax.random.split(k_feats, 4)
    tkeys = jax.random.split(k_tgts, 4)
    features = [
        jax.random.normal(fk, s, dtype=jnp.float32) for fk, s in zip(fkeys, feat_shapes)
    ]
    target = [
        jax.random.normal(tk, s, dtype=jnp.float32) for tk, s in zip(tkeys, feat_shapes)
    ]

    # Likelihoods in (0, 1]
    likelihoods = {
        "y": jax.random.uniform(
            k_ly, (2, 8, 8, 8), dtype=jnp.float32, minval=1e-3, maxval=1.0
        ),
        "z": jax.random.uniform(
            k_lz, (2, 8, 4, 4), dtype=jnp.float32, minval=1e-3, maxval=1.0
        ),
    }

    output = {"likelihoods": likelihoods, "features": features}

    out = fusion_rd_loss_p(output, target, lmbda=0.01)
    out = jax.tree_util.tree_map(jax.block_until_ready, out)

    ref = fusion_rd_loss_p_ref(output, target, lmbda=0.01)
    for k in ("bpp_loss", "mse_loss", "p2_mse", "p3_mse", "p4_mse", "p5_mse", "loss"):
        assert jnp.allclose(out[k], ref[k], rtol=1e-5, atol=1e-5), (
            k, float(out[k]), float(ref[k])
        )

    print("KERNEL_OK")
</pallas_src>

<mosaic_0001>
module attributes {stable_mosaic.version = 11 : i64} {
  func.func @_sum_log_kernel(%arg0: i32, %arg1: i32, %arg2: memref<8x128xf32, #tpu.memory_space<vmem>>, %arg3: memref<1x8x128xf32, #tpu.memory_space<vmem>>) attributes {dimension_semantics = [#tpu.dimension_semantics<parallel>, #tpu.dimension_semantics<arbitrary>], iteration_bounds = array<i64: 1, 1>, scalar_prefetch = 0 : i64, scratch_operands = 0 : i64, tpu.core_type = #tpu.core_type<tc>, window_params = [{transform_indices = @transform_0, window_bounds = array<i64: 8, 128>}, {transform_indices = @transform_1, window_bounds = array<i64: 1, 8, 128>}]} {
    %c0_i32 = arith.constant 0 : i32
    %0 = arith.cmpi eq, %arg1, %c0_i32 : i32
    %1 = arith.extui %0 : i1 to i32
    %c0_i32_0 = arith.constant 0 : i32
    %2 = arith.cmpi ne, %1, %c0_i32_0 : i32
    scf.if %2 {
      %cst = arith.constant 0.000000e+00 : f32
      %15 = vector.broadcast %cst : f32 to vector<1x8x128xf32>
      %c0_8 = arith.constant 0 : index
      %c0_9 = arith.constant 0 : index
      %c0_10 = arith.constant 0 : index
      %16 = vector.load %arg3[%c0_8, %c0_9, %c0_10] : memref<1x8x128xf32, #tpu.memory_space<vmem>>, vector<1x8x128xf32>
      tpu.vector_store %arg3[%c0_8, %c0_9, %c0_10], %15 {strides = array<i32>} : memref<1x8x128xf32, #tpu.memory_space<vmem>>, vector<1x8x128xf32>,
    } else {
    }
    %c1_i32 = arith.constant 1 : i32
    %3 = arith.muli %arg0, %c1_i32 : i32
    %4 = arith.addi %3, %arg1 : i32
    %c8_i32 = arith.constant 8 : i32
    %5 = arith.muli %4, %c8_i32 : i32
    %c0 = arith.constant 0 : index
    %c0_1 = arith.constant 0 : index
    %6 = vector.load %arg2[%c0, %c0_1] : memref<8x128xf32, #tpu.memory_space<vmem>>, vector<8x128xf32>
    %c8_i32_2 = arith.constant 8 : i32
    %7 = arith.addi %5, %c8_i32_2 : i32
    %c8_i32_3 = arith.constant 8 : i32
    %8 = arith.cmpi sle, %7, %c8_i32_3 : i32
    %9 = arith.extui %8 : i1 to i32
    %c0_i32_4 = arith.constant 0 : i32
    %10 = arith.cmpi ne, %9, %c0_i32_4 : i32
    scf.if %10 {
      %15 = math.log %6 : vector<8x128xf32>
      %c0_8 = arith.constant 0 : index
      %c0_9 = arith.constant 0 : index
      %c0_10 = arith.constant 0 : index
      %16 = vector.load %arg3[%c0_8, %c0_9, %c0_10] : memref<1x8x128xf32, #tpu.memory_space<vmem>>, vector<1x8x128xf32>
      %17 = vector.shape_cast %15 : vector<8x128xf32> to vector<1x8x128xf32>
      %cst = arith.constant dense<0.000000e+00> : vector<8x128xf32>
      %18 = vector.multi_reduction <add>, %17, %cst [0] : vector<1x8x128xf32> to vector<8x128xf32>
      %19 = vector.shape_cast %18 : vector<8x128xf32> to vector<1x8x128xf32>
      %20 = arith.addf %16, %19 : vector<1x8x128xf32>
      %c0_11 = arith.constant 0 : index
      %c0_12 = arith.constant 0 : index
      %c0_13 = arith.constant 0 : index
      %21 = vector.load %arg3[%c0_11, %c0_12, %c0_13] : memref<1x8x128xf32, #tpu.memory_space<vmem>>, vector<1x8x128xf32>
      tpu.vector_store %arg3[%c0_11, %c0_12, %c0_13], %20 {strides = array<i32>} : memref<1x8x128xf32, #tpu.memory_space<vmem>>, vector<1x8x128xf32>,
    } else {
    }
    %c8_i32_5 = arith.constant 8 : i32
    %11 = arith.addi %5, %c8_i32_5 : i32
    %c8_i32_6 = arith.constant 8 : i32
    %12 = arith.cmpi sgt, %11, %c8_i32_6 : i32
    %13 = arith.extui %12 : i1 to i32
    %c0_i32_7 = arith.constant 0 : i32
    %14 = arith.cmpi ne, %13, %c0_i32_7 : i32
    scf.if %14 {
      %15 = tpu.iota {dimensions = array<i32: 0>} : vector<8x128xi32>
      %16 = vector.broadcast %5 : i32 to vector<8x128xi32>
      %17 = arith.addi %16, %15 : vector<8x128xi32>
      %c8_i32_8 = arith.constant 8 : i32
      %18 = vector.broadcast %c8_i32_8 : i32 to vector<8x128xi32>
      %19 = arith.cmpi slt, %17, %18 : vector<8x128xi32>
      %cst = arith.constant 1.000000e+00 : f32
      %20 = vector.broadcast %cst : f32 to vector<8x128xf32>
      %21 = arith.select %19, %6, %20 : vector<8x128xi1>, vector<8x128xf32>
      %22 = math.log %21 : vector<8x128xf32>
      %c0_9 = arith.constant 0 : index
      %c0_10 = arith.constant 0 : index
      %c0_11 = arith.constant 0 : index
      %23 = vector.load %arg3[%c0_9, %c0_10, %c0_11] : memref<1x8x128xf32, #tpu.memory_space<vmem>>, vector<1x8x128xf32>
      %24 = vector.shape_cast %22 : vector<8x128xf32> to vector<1x8x128xf32>
      %cst_12 = arith.constant dense<0.000000e+00> : vector<8x128xf32>
      %25 = vector.multi_reduction <add>, %24, %cst_12 [0] : vector<1x8x128xf32> to vector<8x128xf32>
      %26 = vector.shape_cast %25 : vector<8x128xf32> to vector<1x8x128xf32>
      %27 = arith.addf %23, %26 : vector<1x8x128xf32>
      %c0_13 = arith.constant 0 : index
      %c0_14 = arith.constant 0 : index
      %c0_15 = arith.constant 0 : index
      %28 = vector.load %arg3[%c0_13, %c0_14, %c0_15] : memref<1x8x128xf32, #tpu.memory_space<vmem>>, vector<1x8x128xf32>
      tpu.vector_store %arg3[%c0_13, %c0_14, %c0_15], %27 {strides = array<i32>} : memref<1x8x128xf32, #tpu.memory_space<vmem>>, vector<1x8x128xf32>,
    } else {
    }
    return
  }
  func.func @transform_0(%arg0: i32, %arg1: i32) -> (i32, i32) {
    %c0_i32 = arith.constant 0 : i32
    %c0_i32_0 = arith.constant 0 : i32
    return %arg1, %c0_i32 : i32, i32
  }
  func.func @transform_1(%arg0: i32, %arg1: i32) -> (i32, i32, i32) {
    %c0_i32 = arith.constant 0 : i32
    %c0_i32_0 = arith.constant 0 : i32
    %c0_i32_1 = arith.constant 0 : i32
    return %arg0, %c0_i32, %c0_i32_0 : i32, i32, i32
  }
}

</mosaic_0001>

<llo_original>
// kernel: tpu_custom_call.1
$region0: #{tpu_custom_call.1}
  #allocation0 [shape = 'u32[]', space=smem, size = 0x4, offset = 0x4, fixed_abs, tag = 'smem constant byte address 0x4 - core index']
  #allocation1 [shape = 'u32[144,128]{1,0:T(1,128)}', space=vmem, size = 0x12000, scoped, tag = 'internal scratch']
  %s0 = inlined_call_operand.hbm [shape: f32[8,128], index: 0, kind: input, shape index: {}]
  %s1 = inlined_call_operand.hbm [shape: f32[1,8,128], index: 1, kind: output, shape index: {}]
  %s2 = sld [smem:[#allocation0]]
  $region30: #{tpu_custom_call.1} parent=0
    _
  %s4 = ssub.s32 1, %s2
  %s5 = scalar_select 0, %s4, %s2
  $region1: #{tpu_custom_call.1} parent=0
    #allocation2 [shape = 'u8[4096]{0}', space=vmem, size = 0x1000, scoped, tag = 'input window, operand 0, single buffered']
    #allocation3 [shape = 's32[1]{0}', space=sflag, size = 0x4, scoped, tag = 'scoped memory for tpu_custom_call.1']
    #allocation4 [shape = 's32[1]{0}', space=sflag, size = 0x4, scoped, tag = 'scoped memory for tpu_custom_call.1']
    #allocation5 [shape = 'u8[4096]{0}', space=vmem, size = 0x1000, scoped, tag = 'output window, operand 0, single buffered']
    %6 = vsyncpa [#allocation3], 0
    %7 = vsyncpa [#allocation4], 0
    // Predicated region
    $region2: #{tpu_custom_call.1} parent=1 // pred_check
      _
    $region3: #{tpu_custom_call.1} parent=1 // pred_check_branch
      %9 = sbr.rel (0) target = $region5
    $region4: #{tpu_custom_call.1} parent=1 // pred_region
      %s11 = ssub.s32 128, 128
      %12 = vsyncadd [#allocation3], %s11
      %s14 = sshll.u32 [#allocation2], 4
      %s15 = int_to_ptr.vmem [resolvable:$true] %s14
      %17 = dma.hbm_to_vmem [thread:$0]  %s0, 128, %s15, [#allocation3]
    $region5: #{tpu_custom_call.1} parent=1 // pred_fallthru
      _
    // Predicated region
    $region6: #{tpu_custom_call.1} parent=1 // pred_check
      _
    $region7: #{tpu_custom_call.1} parent=1 // pred_check_branch
      %19 = sbr.rel (0) target = $region9
    $region8: #{tpu_custom_call.1} parent=1 // pred_region
      %20 = dma.done [#allocation3], 128
    $region9: #{tpu_custom_call.1} parent=1 // pred_fallthru
      _
    %p21 = scmp.eq.s32.totalorder 0, 0
    // Predicated region
    $region10: #{tpu_custom_call.1} parent=1 // pred_check
      %p22 = pneg %p21
    $region11: #{tpu_custom_call.1} parent=1 // pred_check_branch
      %24 = sbr.rel (%p22) target = $region13
    $region12: #{tpu_custom_call.1} parent=1 // pred_region
      %25 = vst [vmem:[#allocation5] sm:$0xff] 0.0
    $region13: #{tpu_custom_call.1} parent=1 // pred_fallthru
      _
    %s26 = sadd.s32 0, 0
    %s27 = smul.u32 %s26, 8
    %v28 = vld [vmem:[#allocation2] sm:$0xff]
    %s29 = sadd.s32 %s27, 8
    %p30 = scmp.le.s32.totalorder %s29, 8
    // Predicated region
    $region14: #{tpu_custom_call.1} parent=1 // pred_check
      %p31 = pneg %p30
    $region15: #{tpu_custom_call.1} parent=1 // pred_check_branch
      %33 = sbr.rel (%p31) target = $region17
    $region16: #{tpu_custom_call.1} parent=1 // pred_region
      %v34 = vlog2.pop %v28
      %v35 = vmul.f32 %v34, 0.6931472
      %v36 = vld [vmem:[#allocation5] sm:$0xff]
      %v37 = vadd.f32 %v35, 0.0
      %v38 = vadd.f32 %v36, %v37
      %39 = vst [vmem:[#allocation5] sm:$0xff] %v38
    $region17: #{tpu_custom_call.1} parent=1 // pred_fallthru
      _
    %p40 = scmp.gt.s32.totalorder %s29, 8
    // Predicated region
    $region18: #{tpu_custom_call.1} parent=1 // pred_check
      %p41 = pneg %p40
    $region19: #{tpu_custom_call.1} parent=1 // pred_check_branch
      %43 = sbr.rel (%p41) target = $region21
    $region20: #{tpu_custom_call.1} parent=1 // pred_region
      %v44 = vlaneseq
      %v45 = vshrl.u32 %v44, 7
      %v46 = vstv %s27
      %v47 = vadd.s32 %v46, %v45
      %vm48 = vcmp.lt.s32.totalorder %v47, 8
      %v49 = vsel %vm48, %v28, 1.0
      %v50 = vlog2.pop %v49
      %v51 = vmul.f32 %v50, 0.6931472
      %v52 = vld [vmem:[#allocation5] sm:$0xff]
      %v53 = vadd.f32 %v51, 0.0
      %v54 = vadd.f32 %v52, %v53
      %55 = vst [vmem:[#allocation5] sm:$0xff] %v54
    $region21: #{tpu_custom_call.1} parent=1 // pred_fallthru
      _
    // Predicated region
    $region22: #{tpu_custom_call.1} parent=1 // pred_check
      _
    $region23: #{tpu_custom_call.1} parent=1 // pred_check_branch
      %57 = sbr.rel (0) target = $region25
    $region24: #{tpu_custom_call.1} parent=1 // pred_region
      %s59 = ssub.s32 128, 128
      %60 = vsyncadd [#allocation4], %s59
      %s62 = sshll.u32 [#allocation5], 4
      %s63 = int_to_ptr.vmem [resolvable:$true] %s62
      %65 = dma.vmem_to_hbm [thread:$0]  %s63, 128, %s1, [#allocation4]
    $region25: #{tpu_custom_call.1} parent=1 // pred_fallthru
      _
    // Predicated region
    $region26: #{tpu_custom_call.1} parent=1 // pred_check
      _
    $region27: #{tpu_custom_call.1} parent=1 // pred_check_branch
      %67 = sbr.rel (0) target = $region29
    $region28: #{tpu_custom_call.1} parent=1 // pred_region
      %68 = dma.done [#allocation4], 128
    $region29: #{tpu_custom_call.1} parent=1 // pred_fallthru
      _
    %69 = vsyncpa [#allocation3], 1
    %70 = vsyncpa [#allocation4], 1

</llo_original>
